<compile_context>
chip_gen: v5e
topology: v5e:2x2
jax: 0.10.0
libtpu: 0.0.40
codegen_flags: <defaults>
</compile_context>

<pallas_src>
import jax
import jax.numpy as jnp
from jax.experimental import pallas as pl
from jax.experimental.pallas import tpu as pltpu


def classifier_kernel(x_ref, w1_ref, b1_ref, w2_ref, b2_ref, out_ref):
    # Weights arrive pre-transposed ([in, out]) -> native MXU layout, no
    # in-kernel transpose.  Cast of x is a no-op if the caller already supplies
    # bf16 activations (recommended at large B to halve activation HBM bytes).
    x = x_ref[...].astype(w1_ref.dtype)

    # fc1: [B, I] . [I, Hp] -> f32 accumulation on the MXU.
    h = jnp.dot(x, w1_ref[...], preferred_element_type=jnp.float32)
    h = jnp.tanh(h + b1_ref[...])                     # bias + tanh in f32 (EUP)

    # fc2 (tiny): kept in f32 by default for accuracy; still MXU + f32 acc.
    o = jnp.dot(h.astype(w2_ref.dtype), w2_ref[...],
                preferred_element_type=jnp.float32)
    out_ref[...] = (o + b2_ref[...]).astype(out_ref.dtype)


def _round_up(n, m):
    return ((n + m - 1) // m) * m


def _vmem_physical_bytes():
    """Generation-aware physical VMEM (per TensorCore). Conservative fallback."""
    try:
        info = pltpu.get_tpu_info()
        cap = getattr(info, "vmem_capacity_bytes", None)
        if cap:
            return int(cap)
    except Exception:
        pass
    return 64 * 1024 * 1024  # v7x per-TC VMEM -- the smallest of v5e/v6e/v7x


def prepare_params(w1, b1, w2, b2, *, compute_dtype=jnp.bfloat16,
                   fc2_compute_dtype=jnp.float32, lane_multiple=128,
                   pad_classes=False):
    """One-time parameter preparation (init-time, NOT in the per-call path).

    - Transposes weights to [in, out] so the kernel runs plain [M,K]x[K,N]
      contractions (no per-step in-kernel transpose).
    - Zero-pads hidden_size to a lane_multiple (128; use 256 on v6e/v7x for
      large compute-bound shapes) -- exact math: padded hidden units are
      tanh(0)=0 and hit zero w2 rows.
    - num_classes is left UN-padded by default (pad_classes=False): the output
      is written as (B, C) directly, saving ~8x output HBM bytes for C=16.
      Set pad_classes=True only if a lane-dense output slab is required
      downstream (the padded logits are exactly 0; pad b2 with -inf yourself
      if a fused argmax/softmax consumes the padded slab).
    - fc1 weights default to bf16 (bf16-native MXU on v5e/v6e/v7x, halves
      weight DMA); fc2 weights and both biases stay f32; accumulation is f32
      in-kernel.
    """
    H, I = w1.shape
    C, _ = w2.shape
    Hp = _round_up(H, lane_multiple)
    C_out = _round_up(C, lane_multiple) if pad_classes else C

    w1t = jnp.zeros((I, Hp), jnp.float32).at[:, :H].set(w1.T.astype(jnp.float32))
    b1p = jnp.zeros((Hp,), jnp.float32).at[:H].set(b1.astype(jnp.float32))
    w2t = jnp.zeros((Hp, C_out), jnp.float32).at[:H, :C].set(w2.T.astype(jnp.float32))
    b2p = jnp.zeros((C_out,), jnp.float32).at[:C].set(b2.astype(jnp.float32))

    if compute_dtype is not None:
        w1t = w1t.astype(compute_dtype)
    if fc2_compute_dtype is not None:
        w2t = w2t.astype(fc2_compute_dtype)

    return dict(
        w1=w1t,                       # [I, Hp]   (bf16 by default)
        b1=b1p.reshape(1, Hp),        # [1, Hp]   f32
        w2=w2t,                       # [Hp, C_out] f32 by default
        b2=b2p.reshape(1, C_out),     # [1, C_out] f32
        num_classes=C,
    )


def _auto_block_b(B, x_row, out_row, h_row, weight_bytes, budget):
    """block_b from: 2 bufs * block_b*(x_row+out_row) + f32 intermediates
    + resident weights <= VMEM budget; >=2 grid programs for v7x TC sharding."""
    per_row = 2 * (x_row + out_row) + h_row
    avail = max(budget - 2 * weight_bytes, per_row * 8)
    bb = avail // per_row
    bb = min(bb, pl.cdiv(B, 2))        # >= 2 programs: shard across v7x's 2 TCs
    bb = min(bb, 2048)                 # diminishing returns past ~1-2k rows
    bb = max((bb // 8) * 8, 8)         # sublane-aligned
    return int(bb)


def classifier_forward(x, params, *, block_b=None):
    """x: [B, input_size]. Returns [B, num_classes] in x.dtype."""
    B, I = x.shape
    w1, b1, w2, b2 = params["w1"], params["b1"], params["w2"], params["b2"]
    Hp = w1.shape[1]
    C_out = w2.shape[1]
    C = params["num_classes"]
    out_dtype = x.dtype

    # --- cost / VMEM bookkeeping ------------------------------------------
    flops = 2 * B * I * Hp + 2 * B * Hp * C_out
    weight_bytes = (w1.size * w1.dtype.itemsize + b1.size * b1.dtype.itemsize
                    + w2.size * w2.dtype.itemsize + b2.size * b2.dtype.itemsize)
    x_row = I * x.dtype.itemsize
    out_row = C_out * jnp.dtype(out_dtype).itemsize
    h_row = (Hp + C_out) * 4           # f32 intermediates (h, pre-store acc)
    bytes_accessed = x.size * x.dtype.itemsize + weight_bytes + B * out_row
    cost = pl.CostEstimate(flops=flops, transcendentals=B * Hp,
                           bytes_accessed=bytes_accessed)

    phys = _vmem_physical_bytes()
    budget = int(phys * 0.75)          # ~25% headroom under the physical ceiling

    # --- path selection ----------------------------------------------------
    use_grid = block_b is not None
    whole = B * (x_row + out_row + h_row) + weight_bytes
    if not use_grid:
        # Grid-free only if everything fits comfortably, including under
        # v5e's 16 MiB default scoped VMEM.
        if whole > min(budget, 12 * 1024 * 1024):
            use_grid = True
            block_b = _auto_block_b(B, x_row, out_row, h_row, weight_bytes, budget)

    out_shape = jax.ShapeDtypeStruct((B, C_out), out_dtype)

    if not use_grid:
        # Small problem: NO grid.  Whole arrays live in VMEM for a single
        # invocation -> no pipeline prologue/epilogue, no double-buffering.
        vmem_limit = int(min(budget, max(whole * 1.25, 32 * 1024 * 1024)))
        out = pl.pallas_call(
            classifier_kernel,
            out_shape=out_shape,
            in_specs=[pl.BlockSpec(memory_space=pltpu.MemorySpace.VMEM)] * 5,
            out_specs=pl.BlockSpec(memory_space=pltpu.MemorySpace.VMEM),
            compiler_params=pltpu.CompilerParams(vmem_limit_bytes=vmem_limit),
            cost_estimate=cost,
        )(x, w1, b1, w2, b2)
    else:
        # Large batch: 1-D grid over batch rows, "parallel" so it shards across
        # v7x's two TensorCores.  Weights/biases use constant index_maps and
        # stay VMEM-resident; only x/out tiles are pipelined (default
        # double-buffering is enough -- no deeper structure needed).
        need = (2 * block_b * (x_row + out_row) + block_b * h_row
                + 2 * weight_bytes)
        vmem_limit = int(min(budget, max(need * 1.25, 32 * 1024 * 1024)))
        grid = (pl.cdiv(B, block_b),)
        out = pl.pallas_call(
            classifier_kernel,
            out_shape=out_shape,
            grid=grid,
            in_specs=[
                pl.BlockSpec((block_b, I), lambda i: (i, 0)),    # x tile (pipelined)
                pl.BlockSpec((I, Hp), lambda i: (0, 0)),         # w1 resident
                pl.BlockSpec((1, Hp), lambda i: (0, 0)),         # b1 resident
                pl.BlockSpec((Hp, C_out), lambda i: (0, 0)),     # w2 resident
                pl.BlockSpec((1, C_out), lambda i: (0, 0)),      # b2 resident
            ],
            out_specs=pl.BlockSpec((block_b, C_out), lambda i: (i, 0)),
            compiler_params=pltpu.CompilerParams(
                dimension_semantics=("parallel",),
                vmem_limit_bytes=vmem_limit,
            ),
            cost_estimate=cost,
        )(x, w1, b1, w2, b2)

    # Only slices when pad_classes=True was used at init.
    return out if C_out == C else out[:, :C]


if __name__ == "__main__":
    # Shapes implied by the module: x [batch, input_size]; fc1: input->hidden;
    # fc2: hidden->num_classes (non-linear branch of ClassifierNetwork).
    batch, input_size, hidden_size, num_classes = 8, 32, 32, 16

    key = jax.random.PRNGKey(0)
    kx, kw1, kb1, kw2, kb2, kx2 = jax.random.split(key, 6)

    x = jax.random.normal(kx, (batch, input_size), dtype=jnp.float32)

    # PyTorch nn.Linear init: U(-1/sqrt(fan_in), 1/sqrt(fan_in)); [out, in] layout.
    bound1 = 1.0 / (input_size ** 0.5)
    w1 = jax.random.uniform(kw1, (hidden_size, input_size), jnp.float32, -bound1, bound1)
    b1 = jax.random.uniform(kb1, (hidden_size,), jnp.float32, -bound1, bound1)
    bound2 = 1.0 / (hidden_size ** 0.5)
    w2 = jax.random.uniform(kw2, (num_classes, hidden_size), jnp.float32, -bound2, bound2)
    b2 = jax.random.uniform(kb2, (num_classes,), jnp.float32, -bound2, bound2)

    def ref_fwd(xin):
        return jnp.tanh(xin @ w1.T + b1) @ w2.T + b2

    # --- Path 1: exact f32 everywhere, small batch -> grid-free VMEM call ---
    params_f32 = prepare_params(w1, b1, w2, b2, compute_dtype=None)
    out = jax.block_until_ready(classifier_forward(x, params_f32))
    assert out.shape == (batch, num_classes)
    assert jnp.allclose(out, ref_fwd(x), atol=1e-5, rtol=1e-5)

    # --- Path 2: default prep (bf16 fc1 weights, f32 fc2/biases/accum),
    #     larger batch, forced gridded path (2 programs -> both v7x TCs). ---
    big_batch = 256
    xb = jax.random.normal(kx2, (big_batch, input_size), dtype=jnp.float32)
    params_bf16 = prepare_params(w1, b1, w2, b2)          # bf16 fc1 by default
    outb = jax.block_until_ready(classifier_forward(xb, params_bf16, block_b=128))
    assert outb.shape == (big_batch, num_classes)
    assert jnp.allclose(outb, ref_fwd(xb), atol=3e-2, rtol=3e-2)

    print("KERNEL_OK")
</pallas_src>

<mosaic_0001>
module attributes {stable_mosaic.version = 11 : i64} {
  func.func @classifier_kernel(%arg0: memref<8x32xf32, #tpu.memory_space<vmem>>, %arg1: memref<32x128xf32, #tpu.memory_space<vmem>>, %arg2: memref<1x128xf32, #tpu.memory_space<vmem>>, %arg3: memref<128x16xf32, #tpu.memory_space<vmem>>, %arg4: memref<1x16xf32, #tpu.memory_space<vmem>>, %arg5: memref<8x16xf32, #tpu.memory_space<vmem>>) attributes {dimension_semantics = [], scalar_prefetch = 0 : i64, scratch_operands = 0 : i64, tpu.core_type = #tpu.core_type<tc>} {
    %c0 = arith.constant 0 : index
    %c0_0 = arith.constant 0 : index
    %0 = vector.load %arg0[%c0, %c0_0] : memref<8x32xf32, #tpu.memory_space<vmem>>, vector<8x32xf32>
    %c0_1 = arith.constant 0 : index
    %c0_2 = arith.constant 0 : index
    %1 = vector.load %arg1[%c0_1, %c0_2] : memref<32x128xf32, #tpu.memory_space<vmem>>, vector<32x128xf32>
    %cst = arith.constant dense<0.000000e+00> : vector<8x128xf32>
    %2 = tpu.matmul %0, %1, %cst {dimension_numbers = #tpu.dot_dimension_numbers<[1], [0], [0], [1], [0, 0, 1, 1], [], []>} : vector<8x32xf32>, vector<32x128xf32>, vector<8x128xf32> -> vector<8x128xf32>
    %c0_3 = arith.constant 0 : index
    %c0_4 = arith.constant 0 : index
    %3 = vector.load %arg2[%c0_3, %c0_4] : memref<1x128xf32, #tpu.memory_space<vmem>>, vector<1x128xf32>
    %4 = vector.broadcast %3 : vector<1x128xf32> to vector<8x128xf32>
    %5 = arith.addf %2, %4 : vector<8x128xf32>
    %6 = math.tanh %5 : vector<8x128xf32>
    %c0_5 = arith.constant 0 : index
    %c0_6 = arith.constant 0 : index
    %7 = vector.load %arg3[%c0_5, %c0_6] : memref<128x16xf32, #tpu.memory_space<vmem>>, vector<128x16xf32>
    %cst_7 = arith.constant dense<0.000000e+00> : vector<8x16xf32>
    %8 = tpu.matmul %6, %7, %cst_7 {dimension_numbers = #tpu.dot_dimension_numbers<[1], [0], [0], [1], [0, 0, 1, 1], [], []>} : vector<8x128xf32>, vector<128x16xf32>, vector<8x16xf32> -> vector<8x16xf32>
    %c0_8 = arith.constant 0 : index
    %c0_9 = arith.constant 0 : index
    %9 = vector.load %arg4[%c0_8, %c0_9] : memref<1x16xf32, #tpu.memory_space<vmem>>, vector<1x16xf32>
    %10 = vector.broadcast %9 : vector<1x16xf32> to vector<8x16xf32>
    %11 = arith.addf %8, %10 : vector<8x16xf32>
    %c0_10 = arith.constant 0 : index
    %c0_11 = arith.constant 0 : index
    %12 = vector.load %arg5[%c0_10, %c0_11] : memref<8x16xf32, #tpu.memory_space<vmem>>, vector<8x16xf32>
    tpu.vector_store %arg5[%c0_10, %c0_11], %11 {strides = array<i32>} : memref<8x16xf32, #tpu.memory_space<vmem>>, vector<8x16xf32>,
    return
  }
}

</mosaic_0001>

<llo_original>
// kernel: tpu_custom_call.1
$region0: #{tpu_custom_call.1}
  #allocation0 [shape = 'u32[]', space=smem, size = 0x4, offset = 0x4, fixed_abs, tag = 'smem constant byte address 0x4 - core index']
  #allocation1 [shape = 'u32[72,128]{1,0:T(1,128)}', space=vmem, size = 0x9000, scoped, tag = 'internal scratch']
  %s0 = inlined_call_operand.vmem [shape: f32[8,32], index: 0, kind: input, shape index: {}]
  %s1 = inlined_call_operand.vmem [shape: f32[32,128], index: 1, kind: input, shape index: {}]
  %s2 = inlined_call_operand.vmem [shape: f32[1,128], index: 2, kind: input, shape index: {}]
  %s3 = inlined_call_operand.vmem [shape: f32[128,16], index: 3, kind: input, shape index: {}]
  %s4 = inlined_call_operand.vmem [shape: f32[1,16], index: 4, kind: input, shape index: {}]
  %s5 = inlined_call_operand.hbm [shape: f32[8,16], index: 5, kind: output, shape index: {}]
  %s6 = sld [smem:[#allocation0]]
  $region30: #{tpu_custom_call.1} parent=0
    _
  %s8 = ssub.s32 1, %s6
  %s9 = scalar_select 0, %s8, %s6
  $region1: #{tpu_custom_call.1} parent=0
    #allocation2 [shape = 'u8[4096]{0}', space=vmem, size = 0x1000, scoped, tag = 'output window, operand 0, single buffered']
    #allocation3 [shape = 's32[1]{0}', space=sflag, size = 0x4, scoped, tag = 'scoped memory for tpu_custom_call.1']
    %10 = vsyncpa [#allocation3], 0
    // Predicated region
    $region2: #{tpu_custom_call.1} parent=1 // pred_check
      _
    $region3: #{tpu_custom_call.1} parent=1 // pred_check_branch
      %12 = sbr.rel (0) target = $region5
    $region4: #{tpu_custom_call.1} parent=1 // pred_region
      _
    $region5: #{tpu_custom_call.1} parent=1 // pred_fallthru
      _
    // Predicated region
    $region6: #{tpu_custom_call.1} parent=1 // pred_check
      _
    $region7: #{tpu_custom_call.1} parent=1 // pred_check_branch
      %14 = sbr.rel (0) target = $region9
    $region8: #{tpu_custom_call.1} parent=1 // pred_region
      _
    $region9: #{tpu_custom_call.1} parent=1 // pred_fallthru
      _
    // Predicated region
    $region10: #{tpu_custom_call.1} parent=1 // pred_check
      _
    $region11: #{tpu_custom_call.1} parent=1 // pred_check_branch
      %16 = sbr.rel (0) target = $region13
    $region12: #{tpu_custom_call.1} parent=1 // pred_region
      _
    $region13: #{tpu_custom_call.1} parent=1 // pred_fallthru
      _
    // Predicated region
    $region14: #{tpu_custom_call.1} parent=1 // pred_check
      _
    $region15: #{tpu_custom_call.1} parent=1 // pred_check_branch
      %18 = sbr.rel (0) target = $region17
    $region16: #{tpu_custom_call.1} parent=1 // pred_region
      _
    $region17: #{tpu_custom_call.1} parent=1 // pred_fallthru
      _
    // Predicated region
    $region18: #{tpu_custom_call.1} parent=1 // pred_check
      _
    $region19: #{tpu_custom_call.1} parent=1 // pred_check_branch
      %20 = sbr.rel (0) target = $region21
    $region20: #{tpu_custom_call.1} parent=1 // pred_region
      _
    $region21: #{tpu_custom_call.1} parent=1 // pred_fallthru
      _
    %v21 = vld [vmem:[%s0] sm:$0xff]
    %v22 = vld [vmem:[%s1] sm:$0xff]
    %v23 = vld [vmem:[%s1 + $0x8] sm:$0xff]
    %v24 = vld [vmem:[%s1 + $0x10] sm:$0xff]
    %v25 = vld [vmem:[%s1 + $0x18] sm:$0xff]
    %v26 = vld [vmem:[%s2] sm:$0x1]
    %v28 = vperm.slane %v26, 0
    %vm30 = vcmask 261120
    %v32 = vsel %vm30, %v21, 0
    %34 = vmatpush.msra.mxu0 0.0
    %35 = vmatpush.msra.mxu0 0.0
    %36 = vmatpush.msra.mxu0 0.0
    %37 = vmatpush.msra.mxu0 0.0
    %38 = vmatpush.msra.mxu0 0.0
    %39 = vmatpush.msra.mxu0 0.0
    %40 = vmatpush.msra.mxu0 0.0
    %41 = vmatpush.msra.mxu0 0.0
    %42 = vmatpush.msra.mxu0 0.0
    %43 = vmatpush.msra.mxu0 0.0
    %44 = vmatpush.msra.mxu0 0.0
    %45 = vmatpush.msra.mxu0 0.0
    %46 = vmatpush.msra.mxu0 %v25
    %47 = vmatpush.msra.mxu0 %v24
    %48 = vmatpush.msra.mxu0 %v23
    %49 = vmatpush.msra.mxu0 %v22
    %50 = vmatmul.f32.gmra.mxu0 %v32
    %v51 = vpop.f32.mrf.mxu0
    %v52 = vadd.f32 %v28, %v51
    %53 = vdwg.mxu0
    %v54 = vtanh.pop %v52
    %v55 = vld [vmem:[%s3] sm:$0xff]
    %v56 = vld [vmem:[%s3 + $0x8] sm:$0xff]
    %v57 = vld [vmem:[%s3 + $0x10] sm:$0xff]
    %v58 = vld [vmem:[%s3 + $0x18] sm:$0xff]
    %v59 = vld [vmem:[%s3 + $0x20] sm:$0xff]
    %v60 = vld [vmem:[%s3 + $0x28] sm:$0xff]
    %v61 = vld [vmem:[%s3 + $0x30] sm:$0xff]
    %v62 = vld [vmem:[%s3 + $0x38] sm:$0xff]
    %v63 = vld [vmem:[%s3 + $0x40] sm:$0xff]
    %v64 = vld [vmem:[%s3 + $0x48] sm:$0xff]
    %v65 = vld [vmem:[%s3 + $0x50] sm:$0xff]
    %v66 = vld [vmem:[%s3 + $0x58] sm:$0xff]
    %v67 = vld [vmem:[%s3 + $0x60] sm:$0xff]
    %v68 = vld [vmem:[%s3 + $0x68] sm:$0xff]
    %v69 = vld [vmem:[%s3 + $0x70] sm:$0xff]
    %v70 = vld [vmem:[%s3 + $0x78] sm:$0xff]
    %v71 = vld [vmem:[%s4] sm:$0x1]
    %v73 = vperm.slane %v71, 0
    %75 = vmatpush.msra.mxu0 %v70
    %76 = vmatpush.msra.mxu0 %v69
    %77 = vmatpush.msra.mxu0 %v68
    %78 = vmatpush.msra.mxu0 %v67
    %79 = vmatpush.msra.mxu0 %v66
    %80 = vmatpush.msra.mxu0 %v65
    %81 = vmatpush.msra.mxu0 %v64
    %82 = vmatpush.msra.mxu0 %v63
    %83 = vmatpush.msra.mxu0 %v62
    %84 = vmatpush.msra.mxu0 %v61
    %85 = vmatpush.msra.mxu0 %v60
    %86 = vmatpush.msra.mxu0 %v59
    %87 = vmatpush.msra.mxu0 %v58
    %88 = vmatpush.msra.mxu0 %v57
    %89 = vmatpush.msra.mxu0 %v56
    %90 = vmatpush.msra.mxu0 %v55
    %91 = vmatmul.f32.gmra.mxu0 %v54
    %v92 = vpop.f32.mrf.mxu0
    %v93 = vadd.f32 %v73, %v92
    %94 = vdwg.mxu0
    %vm95 = vcmask 130048
    %96 = vst.msk [vmem:[#allocation2] sm:$0xff] %vm95, %v93
    // Predicated region
    $region22: #{tpu_custom_call.1} parent=1 // pred_check
      _
    $region23: #{tpu_custom_call.1} parent=1 // pred_check_branch
      %98 = sbr.rel (0) target = $region25
    $region24: #{tpu_custom_call.1} parent=1 // pred_region
      %100 = vsyncadd [#allocation3], 0
      %s102 = sshll.u32 [#allocation2], 4
      %s103 = int_to_ptr.vmem [resolvable:$true] %s102
      %s104 = sshll.u32 %s5, 4
      %s105 = int_to_ptr.hbm [resolvable:$true] %s104
      %107 = dma.vmem_to_hbm [thread:$0]  %s103, 128, %s105, [#allocation3]
    $region25: #{tpu_custom_call.1} parent=1 // pred_fallthru
      _
    // Predicated region
    $region26: #{tpu_custom_call.1} parent=1 // pred_check
      _
    $region27: #{tpu_custom_call.1} parent=1 // pred_check_branch
      %109 = sbr.rel (0) target = $region29
    $region28: #{tpu_custom_call.1} parent=1 // pred_region
      %111 = dma.done [#allocation3], 128
    $region29: #{tpu_custom_call.1} parent=1 // pred_fallthru
      _
    %112 = vsyncpa [#allocation3], 1

</llo_original>
